<compile_context>
chip_gen: v7x
topology: tpu7x:2x2x1
jax: 0.10.0
libtpu: 0.0.40
codegen_flags: <defaults>
</compile_context>

<pallas_src>
import jax
import jax.numpy as jnp
from jax.experimental import pallas as pl
from jax.experimental.pallas import tpu as pltpu


def _mlp_kernel(x_ref, w1_ref, b1_ref, w2_ref, b2_ref, o_ref):
    # x_ref : (1, TILE_N)  f32  (batch on lanes)
    # w1_ref: (H, 1)       f32  (hidden on sublanes)
    # b1_ref: (H, 1)       f32
    # w2_ref: (H, 1)       f32
    # b2_ref: (1,)         f32  (SMEM scalar)
    # o_ref : (1, TILE_N)  f32
    x = x_ref[...]                                   # (1, TILE_N)
    # Layer 1: rank-1 outer product + bias + ReLU, all on the VPU.
    h = jnp.maximum(w1_ref[...] * x + b1_ref[...], 0.0)       # (H, TILE_N)
    # Layer 2: elementwise scale by w2 then cross-sublane sum (XLU reduce).
    y = jnp.sum(h * w2_ref[...], axis=0, keepdims=True)       # (1, TILE_N)
    o_ref[...] = y + b2_ref[0]


def simple_nn_forward(x, w1, b1, w2, b2, *, tile_n=512):
    """Forward pass of SimpleNN.

    x : (N, 1) f32    w1: (1, H) f32    b1: (1, H) f32
    w2: (H, 1) f32    b2: (1, 1) f32
    Returns (N, 1) f32, matching relu(x @ w1 + b1) @ w2 + b2.
    """
    n = x.shape[0]
    hidden = w1.shape[1]

    # Pad N up to a multiple of tile_n so every grid step sees a full,
    # lane-aligned tile (padded lanes are computed and discarded).
    n_pad = pl.cdiv(n, tile_n) * tile_n
    x_row = jnp.zeros((1, n_pad), jnp.float32).at[0, :n].set(x[:, 0])

    # Parameters in kernel layout: hidden on the sublane axis.
    w1_col = w1.reshape(hidden, 1).astype(jnp.float32)
    b1_col = b1.reshape(hidden, 1).astype(jnp.float32)
    w2_col = w2.reshape(hidden, 1).astype(jnp.float32)
    b2_s = b2.reshape(1).astype(jnp.float32)

    grid = (n_pad // tile_n,)
    out_row = pl.pallas_call(
        _mlp_kernel,
        out_shape=jax.ShapeDtypeStruct((1, n_pad), jnp.float32),
        grid=grid,
        in_specs=[
            pl.BlockSpec((1, tile_n), lambda i: (0, i)),          # x tile
            pl.BlockSpec((hidden, 1), lambda i: (0, 0)),          # w1 (resident)
            pl.BlockSpec((hidden, 1), lambda i: (0, 0)),          # b1 (resident)
            pl.BlockSpec((hidden, 1), lambda i: (0, 0)),          # w2 (resident)
            pl.BlockSpec(memory_space=pltpu.MemorySpace.SMEM),    # b2 scalar
        ],
        out_specs=pl.BlockSpec((1, tile_n), lambda i: (0, i)),
        compiler_params=pltpu.CompilerParams(
            dimension_semantics=("parallel",)),
    )(x_row, w1_col, b1_col, w2_col, b2_s)

    return out_row[0, :n].reshape(n, 1)


if __name__ == "__main__":
    hidden_neurons = 32   # slider value (SMALL, deterministic)
    n_rows = 8            # number of "dia" samples

    key = jax.random.PRNGKey(0)
    k_x, k_w1, k_b1, k_w2, k_b2 = jax.random.split(key, 5)

    # Input: column vector of "days", shape (N, 1) like x.view(-1, 1)
    x = jax.random.normal(k_x, (n_rows, 1), dtype=jnp.float32)

    # Parameters (deterministic init), math-friendly (in, out) layout.
    w1 = jax.random.normal(k_w1, (1, hidden_neurons), dtype=jnp.float32) * 0.5
    b1 = jax.random.normal(k_b1, (1, hidden_neurons), dtype=jnp.float32) * 0.1
    w2 = jax.random.normal(k_w2, (hidden_neurons, 1), dtype=jnp.float32) * 0.5
    b2 = jax.random.normal(k_b2, (1, 1), dtype=jnp.float32) * 0.1

    # Toy-size check (single grid step, padded lanes discarded).
    out = jax.block_until_ready(simple_nn_forward(x, w1, b1, w2, b2))
    ref = jnp.maximum(x @ w1 + b1, 0.0) @ w2 + b2
    assert out.shape == (n_rows, 1)
    assert jnp.allclose(out, ref, atol=1e-5, rtol=1e-5)

    # Larger check exercising multiple grid steps + padding on the last tile.
    n_big = 1000
    x_big = jax.random.normal(jax.random.PRNGKey(1), (n_big, 1), dtype=jnp.float32)
    out_big = jax.block_until_ready(
        simple_nn_forward(x_big, w1, b1, w2, b2, tile_n=256))
    ref_big = jnp.maximum(x_big @ w1 + b1, 0.0) @ w2 + b2
    assert out_big.shape == (n_big, 1)
    assert jnp.allclose(out_big, ref_big, atol=1e-5, rtol=1e-5)

    print("KERNEL_OK")
</pallas_src>

<mosaic_0001>
module attributes {stable_mosaic.version = 11 : i64} {
  func.func @_mlp_kernel(%arg0: i32, %arg1: memref<1x512xf32, #tpu.memory_space<vmem>>, %arg2: memref<32x1xf32, #tpu.memory_space<vmem>>, %arg3: memref<32x1xf32, #tpu.memory_space<vmem>>, %arg4: memref<32x1xf32, #tpu.memory_space<vmem>>, %arg5: memref<1xf32, #tpu.memory_space<smem>>, %arg6: memref<1x512xf32, #tpu.memory_space<vmem>>) attributes {dimension_semantics = [#tpu.dimension_semantics<parallel>], iteration_bounds = array<i64: 1>, scalar_prefetch = 0 : i64, scratch_operands = 0 : i64, tpu.core_type = #tpu.core_type<tc>, window_params = [{transform_indices = @transform_0, window_bounds = array<i64: 1, 512>}, {pipeline_mode = #tpu.pipeline_mode<synchronous>, transform_indices = @transform_1, window_bounds = array<i64: 32, 1>}, {pipeline_mode = #tpu.pipeline_mode<synchronous>, transform_indices = @transform_2, window_bounds = array<i64: 32, 1>}, {pipeline_mode = #tpu.pipeline_mode<synchronous>, transform_indices = @transform_3, window_bounds = array<i64: 32, 1>}, {transform_indices = @transform_4, window_bounds = array<i64: 1>}, {transform_indices = @transform_5, window_bounds = array<i64: 1, 512>}]} {
    %c0 = arith.constant 0 : index
    %c0_0 = arith.constant 0 : index
    %0 = vector.load %arg1[%c0, %c0_0] : memref<1x512xf32, #tpu.memory_space<vmem>>, vector<1x512xf32>
    %c0_1 = arith.constant 0 : index
    %c0_2 = arith.constant 0 : index
    %1 = vector.load %arg2[%c0_1, %c0_2] : memref<32x1xf32, #tpu.memory_space<vmem>>, vector<32x1xf32>
    %2 = vector.broadcast %1 : vector<32x1xf32> to vector<32x512xf32>
    %3 = vector.broadcast %0 : vector<1x512xf32> to vector<32x512xf32>
    %4 = arith.mulf %2, %3 : vector<32x512xf32>
    %c0_3 = arith.constant 0 : index
    %c0_4 = arith.constant 0 : index
    %5 = vector.load %arg3[%c0_3, %c0_4] : memref<32x1xf32, #tpu.memory_space<vmem>>, vector<32x1xf32>
    %6 = vector.broadcast %5 : vector<32x1xf32> to vector<32x512xf32>
    %7 = arith.addf %4, %6 : vector<32x512xf32>
    %cst = arith.constant 0.000000e+00 : f32
    %8 = vector.broadcast %cst : f32 to vector<32x512xf32>
    %9 = arith.maximumf %7, %8 : vector<32x512xf32>
    %c0_5 = arith.constant 0 : index
    %c0_6 = arith.constant 0 : index
    %10 = vector.load %arg4[%c0_5, %c0_6] : memref<32x1xf32, #tpu.memory_space<vmem>>, vector<32x1xf32>
    %11 = vector.broadcast %10 : vector<32x1xf32> to vector<32x512xf32>
    %12 = arith.mulf %9, %11 : vector<32x512xf32>
    %cst_7 = arith.constant dense<0.000000e+00> : vector<512xf32>
    %13 = vector.multi_reduction <add>, %12, %cst_7 [0] : vector<32x512xf32> to vector<512xf32>
    %14 = vector.shape_cast %13 : vector<512xf32> to vector<1x512xf32>
    %c0_8 = arith.constant 0 : index
    %15 = memref.load %arg5[%c0_8] : memref<1xf32, #tpu.memory_space<smem>>
    %16 = vector.broadcast %15 : f32 to vector<1x512xf32>
    %17 = arith.addf %14, %16 : vector<1x512xf32>
    %c0_9 = arith.constant 0 : index
    %c0_10 = arith.constant 0 : index
    %18 = vector.load %arg6[%c0_9, %c0_10] : memref<1x512xf32, #tpu.memory_space<vmem>>, vector<1x512xf32>
    tpu.vector_store %arg6[%c0_9, %c0_10], %17 {strides = array<i32>} : memref<1x512xf32, #tpu.memory_space<vmem>>, vector<1x512xf32>,
    return
  }
  func.func @transform_0(%arg0: i32) -> (i32, i32) {
    %c0_i32 = arith.constant 0 : i32
    %c0_i32_0 = arith.constant 0 : i32
    return %c0_i32, %arg0 : i32, i32
  }
  func.func @transform_1(%arg0: i32) -> (i32, i32) {
    %c0_i32 = arith.constant 0 : i32
    %c0_i32_0 = arith.constant 0 : i32
    %c0_i32_1 = arith.constant 0 : i32
    return %c0_i32, %c0_i32_0 : i32, i32
  }
  func.func @transform_2(%arg0: i32) -> (i32, i32) {
    %c0_i32 = arith.constant 0 : i32
    %c0_i32_0 = arith.constant 0 : i32
    %c0_i32_1 = arith.constant 0 : i32
    return %c0_i32, %c0_i32_0 : i32, i32
  }
  func.func @transform_3(%arg0: i32) -> (i32, i32) {
    %c0_i32 = arith.constant 0 : i32
    %c0_i32_0 = arith.constant 0 : i32
    %c0_i32_1 = arith.constant 0 : i32
    return %c0_i32, %c0_i32_0 : i32, i32
  }
  func.func @transform_4(%arg0: i32) -> i32 {
    %c0_i32 = arith.constant 0 : i32
    %c0_i32_0 = arith.constant 0 : i32
    return %c0_i32 : i32
  }
  func.func @transform_5(%arg0: i32) -> (i32, i32) {
    %c0_i32 = arith.constant 0 : i32
    %c0_i32_0 = arith.constant 0 : i32
    return %c0_i32, %arg0 : i32, i32
  }
}

</mosaic_0001>

<llo_original>
// kernel: tpu_custom_call.1
$region0: #{tpu_custom_call.1}
  #allocation0 [shape = 'u32[]', space=smem, size = 0x4, offset = 0x4, fixed_abs, tag = 'smem constant byte address 0x4 - core index']
  #allocation1 [shape = 'u32[144,128]{1,0:T(1,128)}', space=vmem, size = 0x12000, scoped, tag = 'internal scratch']
  #allocation2 [shape = 'f32[1]{0:T(128)S(6)}', space=smem, size = 0x200, scoped, tag = 'scoped memory for tpu_custom_call.1']
  %s0 = inlined_call_operand.vmem [shape: f32[1,512], index: 0, kind: input, shape index: {}]
  %s1 = inlined_call_operand.vmem [shape: f32[32,1], index: 1, kind: input, shape index: {}]
  %s2 = inlined_call_operand.vmem [shape: f32[32,1], index: 2, kind: input, shape index: {}]
  %s3 = inlined_call_operand.vmem [shape: f32[32,1], index: 3, kind: input, shape index: {}]
  %s4 = inlined_call_operand.<no memory space> [shape: f32[1], index: 4, kind: input, shape index: {}]
  %s5 = inlined_call_operand.hbm [shape: f32[1,512], index: 5, kind: output, shape index: {}]
  %s6 = sld [smem:[#allocation0]]
  $region30: #{tpu_custom_call.1} parent=0
    _
  %s8 = ssub.s32 1, %s6
  %s9 = scalar_select 0, %s8, %s6
  %10 = sst [smem:[#allocation2]] %s4
  $region1: #{tpu_custom_call.1} parent=0
    #allocation3 [shape = 'u8[2048]{0}', space=vmem, size = 0x800, scoped, tag = 'output window, operand 0, single buffered']
    #allocation4 [shape = 's32[1]{0}', space=sflag, size = 0x4, scoped, tag = 'scoped memory for tpu_custom_call.1']
    %11 = vsyncpa [#allocation4], 0
    // Predicated region
    $region2: #{tpu_custom_call.1} parent=1 // pred_check
      _
    $region3: #{tpu_custom_call.1} parent=1 // pred_check_branch
      %13 = sbr.rel (0) target = $region5
    $region4: #{tpu_custom_call.1} parent=1 // pred_region
      _
    $region5: #{tpu_custom_call.1} parent=1 // pred_fallthru
      _
    // Predicated region
    $region6: #{tpu_custom_call.1} parent=1 // pred_check
      _
    $region7: #{tpu_custom_call.1} parent=1 // pred_check_branch
      %15 = sbr.rel (0) target = $region9
    $region8: #{tpu_custom_call.1} parent=1 // pred_region
      _
    $region9: #{tpu_custom_call.1} parent=1 // pred_fallthru
      _
    // Predicated region
    $region10: #{tpu_custom_call.1} parent=1 // pred_check
      _
    $region11: #{tpu_custom_call.1} parent=1 // pred_check_branch
      %17 = sbr.rel (0) target = $region13
    $region12: #{tpu_custom_call.1} parent=1 // pred_region
      _
    $region13: #{tpu_custom_call.1} parent=1 // pred_fallthru
      _
    // Predicated region
    $region14: #{tpu_custom_call.1} parent=1 // pred_check
      _
    $region15: #{tpu_custom_call.1} parent=1 // pred_check_branch
      %19 = sbr.rel (0) target = $region17
    $region16: #{tpu_custom_call.1} parent=1 // pred_region
      _
    $region17: #{tpu_custom_call.1} parent=1 // pred_fallthru
      _
    // Predicated region
    $region18: #{tpu_custom_call.1} parent=1 // pred_check
      _
    $region19: #{tpu_custom_call.1} parent=1 // pred_check_branch
      %21 = sbr.rel (0) target = $region21
    $region20: #{tpu_custom_call.1} parent=1 // pred_region
      _
    $region21: #{tpu_custom_call.1} parent=1 // pred_fallthru
      _
    %v22 = vld [vmem:[%s0] sm:$0xf]
    %v23 = vld [vmem:[%s1] sm:$0xff]
    %v24 = vld [vmem:[%s1 + $0x8] sm:$0xff]
    %v25 = vld [vmem:[%s1 + $0x10] sm:$0xff]
    %v26 = vld [vmem:[%s1 + $0x18] sm:$0xff]
    %28 = vset.pattern.permute.xlu0 0
    %29 = vperm.xlu0 %28, %v23
    %v30 = vpop.permute.xlu0 %29
    %33 = vset.pattern.permute.xlu0 0
    %34 = vperm.xlu0 %33, %v24
    %v35 = vpop.permute.xlu0 %34
    %38 = vset.pattern.permute.xlu0 0
    %39 = vperm.xlu0 %38, %v25
    %v40 = vpop.permute.xlu0 %39
    %43 = vset.pattern.permute.xlu0 0
    %44 = vperm.xlu0 %43, %v26
    %v45 = vpop.permute.xlu0 %44
    %v48 = vlaneseq
    %v49 = vshrl.u32 %v48, 7
    %v50 = vsub.s32 0, %v49
    %v51 = vrot.slane %v22, %v50
    %v52 = vlaneseq
    %v53 = vshrl.u32 %v52, 7
    %v54 = vsub.s32 1, %v53
    %v55 = vrot.slane %v22, %v54
    %v56 = vlaneseq
    %v57 = vshrl.u32 %v56, 7
    %v58 = vsub.s32 2, %v57
    %v59 = vrot.slane %v22, %v58
    %v60 = vlaneseq
    %v61 = vshrl.u32 %v60, 7
    %v62 = vsub.s32 3, %v61
    %v63 = vrot.slane %v22, %v62
    %v68 = vmul.f32 %v30, %v51
    %v69 = vmul.f32 %v30, %v55
    %v70 = vmul.f32 %v30, %v59
    %v71 = vmul.f32 %v30, %v63
    %v72 = vmul.f32 %v35, %v51
    %v73 = vmul.f32 %v35, %v55
    %v74 = vmul.f32 %v35, %v59
    %v75 = vmul.f32 %v35, %v63
    %v76 = vmul.f32 %v40, %v51
    %v77 = vmul.f32 %v40, %v55
    %v78 = vmul.f32 %v40, %v59
    %v79 = vmul.f32 %v40, %v63
    %v80 = vmul.f32 %v45, %v51
    %v81 = vmul.f32 %v45, %v55
    %v82 = vmul.f32 %v45, %v59
    %v83 = vmul.f32 %v45, %v63
    %v84 = vld [vmem:[%s2] sm:$0xff]
    %v85 = vld [vmem:[%s2 + $0x8] sm:$0xff]
    %v86 = vld [vmem:[%s2 + $0x10] sm:$0xff]
    %v87 = vld [vmem:[%s2 + $0x18] sm:$0xff]
    %89 = vset.pattern.permute.xlu0 0
    %90 = vperm.xlu0 %89, %v84
    %v91 = vpop.permute.xlu0 %90
    %94 = vset.pattern.permute.xlu0 0
    %95 = vperm.xlu0 %94, %v85
    %v96 = vpop.permute.xlu0 %95
    %99 = vset.pattern.permute.xlu0 0
    %100 = vperm.xlu0 %99, %v86
    %v101 = vpop.permute.xlu0 %100
    %104 = vset.pattern.permute.xlu0 0
    %105 = vperm.xlu0 %104, %v87
    %v106 = vpop.permute.xlu0 %105
    %v108 = vadd.f32 %v68, %v91
    %v109 = vadd.f32 %v69, %v91
    %v110 = vadd.f32 %v70, %v91
    %v111 = vadd.f32 %v71, %v91
    %v112 = vadd.f32 %v72, %v96
    %v113 = vadd.f32 %v73, %v96
    %v114 = vadd.f32 %v74, %v96
    %v115 = vadd.f32 %v75, %v96
    %v116 = vadd.f32 %v76, %v101
    %v117 = vadd.f32 %v77, %v101
    %v118 = vadd.f32 %v78, %v101
    %v119 = vadd.f32 %v79, %v101
    %v120 = vadd.f32 %v80, %v106
    %v121 = vadd.f32 %v81, %v106
    %v122 = vadd.f32 %v82, %v106
    %v123 = vadd.f32 %v83, %v106
    %v124 = vmax.f32 %v108, 0.0
    %v125 = vmax.f32 %v109, 0.0
    %v126 = vmax.f32 %v110, 0.0
    %v127 = vmax.f32 %v111, 0.0
    %v128 = vmax.f32 %v112, 0.0
    %v129 = vmax.f32 %v113, 0.0
    %v130 = vmax.f32 %v114, 0.0
    %v131 = vmax.f32 %v115, 0.0
    %v132 = vmax.f32 %v116, 0.0
    %v133 = vmax.f32 %v117, 0.0
    %v134 = vmax.f32 %v118, 0.0
    %v135 = vmax.f32 %v119, 0.0
    %v136 = vmax.f32 %v120, 0.0
    %v137 = vmax.f32 %v121, 0.0
    %v138 = vmax.f32 %v122, 0.0
    %v139 = vmax.f32 %v123, 0.0
    %v140 = vld [vmem:[%s3] sm:$0xff]
    %v141 = vld [vmem:[%s3 + $0x8] sm:$0xff]
    %v142 = vld [vmem:[%s3 + $0x10] sm:$0xff]
    %v143 = vld [vmem:[%s3 + $0x18] sm:$0xff]
    %145 = vset.pattern.permute.xlu0 0
    %146 = vperm.xlu0 %145, %v140
    %v147 = vpop.permute.xlu0 %146
    %150 = vset.pattern.permute.xlu0 0
    %151 = vperm.xlu0 %150, %v141
    %v152 = vpop.permute.xlu0 %151
    %155 = vset.pattern.permute.xlu0 0
    %156 = vperm.xlu0 %155, %v142
    %v157 = vpop.permute.xlu0 %156
    %160 = vset.pattern.permute.xlu0 0
    %161 = vperm.xlu0 %160, %v143
    %v162 = vpop.permute.xlu0 %161
    %v164 = vmul.f32 %v124, %v147
    %v165 = vmul.f32 %v125, %v147
    %v166 = vmul.f32 %v126, %v147
    %v167 = vmul.f32 %v127, %v147
    %v168 = vmul.f32 %v128, %v152
    %v169 = vmul.f32 %v129, %v152
    %v170 = vmul.f32 %v130, %v152
    %v171 = vmul.f32 %v131, %v152
    %v172 = vmul.f32 %v132, %v157
    %v173 = vmul.f32 %v133, %v157
    %v174 = vmul.f32 %v134, %v157
    %v175 = vmul.f32 %v135, %v157
    %v176 = vmul.f32 %v136, %v162
    %v177 = vmul.f32 %v137, %v162
    %v178 = vmul.f32 %v138, %v162
    %v179 = vmul.f32 %v139, %v162
    %v180 = vadd.f32 %v164, %v168
    %v181 = vadd.f32 %v180, %v172
    %v182 = vadd.f32 %v181, %v176
    %v183 = vrot.slane %v182, 4
    %v184 = vadd.f32 %v182, %v183
    %v185 = vrot.slane %v184, 2
    %v186 = vadd.f32 %v184, %v185
    %v187 = vrot.slane %v186, 1
    %v188 = vadd.f32 %v186, %v187
    %v189 = vadd.f32 %v165, %v169
    %v190 = vadd.f32 %v189, %v173
    %v191 = vadd.f32 %v190, %v177
    %v192 = vrot.slane %v191, 4
    %v193 = vadd.f32 %v191, %v192
    %v194 = vrot.slane %v193, 2
    %v195 = vadd.f32 %v193, %v194
    %v196 = vrot.slane %v195, 1
    %v197 = vadd.f32 %v195, %v196
    %v198 = vadd.f32 %v166, %v170
    %v199 = vadd.f32 %v198, %v174
    %v200 = vadd.f32 %v199, %v178
    %v201 = vrot.slane %v200, 4
    %v202 = vadd.f32 %v200, %v201
    %v203 = vrot.slane %v202, 2
    %v204 = vadd.f32 %v202, %v203
    %v205 = vrot.slane %v204, 1
    %v206 = vadd.f32 %v204, %v205
    %v207 = vadd.f32 %v167, %v171
    %v208 = vadd.f32 %v207, %v175
    %v209 = vadd.f32 %v208, %v179
    %v210 = vrot.slane %v209, 4
    %v211 = vadd.f32 %v209, %v210
    %v212 = vrot.slane %v211, 2
    %v213 = vadd.f32 %v211, %v212
    %v214 = vrot.slane %v213, 1
    %v215 = vadd.f32 %v213, %v214
    %s216 = sld [smem:[#allocation2]]
    %v217 = vstv %s216
    %v218 = vadd.f32 %v188, %v217
    %v219 = vadd.f32 %v197, %v217
    %v220 = vadd.f32 %v206, %v217
    %v221 = vadd.f32 %v215, %v217
    %v226 = vcombine.low %v218, %v219
    %v227 = vcombine.low %v220, %v221
    %v229 = vunpack.c.l.s4 1966171168
    %v230 = vunpack.c.0.s8 %v229
    %v231 = vlaneseq
    %v232 = vshrl.u32 %v231, 7
    %v233 = vsub.s32 %v230, %v232
    %v234 = vrot.slane %v226, %v233
    %v236 = vunpack.c.l.s4 1966171168
    %v237 = vunpack.c.0.s8 %v236
    %v238 = vlaneseq
    %v239 = vshrl.u32 %v238, 7
    %v240 = vsub.s32 %v237, %v239
    %v241 = vrot.slane %v227, %v240
    %v242 = vcombine.low %v234, %v241
    %v244 = vunpack.c.l.s4 1966171168
    %v245 = vunpack.c.0.s8 %v244
    %v246 = vlaneseq
    %v247 = vshrl.u32 %v246, 7
    %v248 = vsub.s32 %v245, %v247
    %v249 = vrot.slane %v242, %v248
    %v251 = vlaneseq
    %vm252 = vcmp.ge.s32.totalorder %v251, 0
    %vm253 = vcmp.lt.s32.totalorder %v251, 512
    %vm254 = vmand %vm252, %vm253
    %255 = vst.msk [vmem:[#allocation3] sm:$0xf] %vm254, %v249
    // Predicated region
    $region22: #{tpu_custom_call.1} parent=1 // pred_check
      _
    $region23: #{tpu_custom_call.1} parent=1 // pred_check_branch
      %257 = sbr.rel (0) target = $region25
    $region24: #{tpu_custom_call.1} parent=1 // pred_region
      %s259 = ssub.s32 64, 64
      %260 = vsyncadd [#allocation4], %s259
      %s262 = sshll.u32 [#allocation3], 4
      %s263 = int_to_ptr.vmem [resolvable:$true] %s262
      %265 = dma.vmem_to_hbm [thread:$0]  %s263, 64, %s5, [#allocation4]
    $region25: #{tpu_custom_call.1} parent=1 // pred_fallthru
      _
    // Predicated region
    $region26: #{tpu_custom_call.1} parent=1 // pred_check
      _
    $region27: #{tpu_custom_call.1} parent=1 // pred_check_branch
      %267 = sbr.rel (0) target = $region29
    $region28: #{tpu_custom_call.1} parent=1 // pred_region
      %268 = dma.done [#allocation4], 64
    $region29: #{tpu_custom_call.1} parent=1 // pred_fallthru
      _
    %269 = vsyncpa [#allocation4], 1

</llo_original>
